<compile_context>
chip_gen: v5e
topology: v5e:2x2
jax: 0.10.0
libtpu: 0.0.40
codegen_flags: <defaults>
</compile_context>

<pallas_src>
import jax
import jax.numpy as jnp
import numpy as np
from jax.experimental import pallas as pl
from jax.experimental.pallas import tpu as pltpu

N_STATES = 4      # CartPole observation dim
N_ACTIONS = 2     # CartPole action dim
HIDDEN = 50

LANES = 128                                  # lane-dense padded feature width
B1_ROW = N_STATES                            # slab row holding b1 (+ the "1" lane)
W2_OFF = ((N_STATES + 1 + 7) // 8) * 8       # sublane-aligned start of W2 block (= 8)
SLAB_ROWS = W2_OFF + LANES                   # total slab rows (= 136)
ONES_LANE = HIDDEN                           # hidden lane carrying constant 1 (folds b2)

B_BLOCK = 256                                # batch rows per grid step (review: 256-512)


def _round_up(x, m):
    return ((x + m - 1) // m) * m


# ----------------------------- kernels ---------------------------------------

def _q_tile(x_ref, p_ref):
    """Lane-dense Q tile for the current block: relu(x@W1+b1) @ W2 (+b2 folded)."""
    x = x_ref[...]                                           # (rows, N_STATES)

    # Layer 1 on the VPU: K=4 is far too small to pay an MXU push/pop round trip.
    acc = x[:, 0:1] * p_ref[0:1, :]
    for k in range(1, N_STATES):                             # unrolled at trace time
        acc = acc + x[:, k:k + 1] * p_ref[k:k + 1, :]
    h = jnp.maximum(acc + p_ref[B1_ROW:B1_ROW + 1, :], 0.0)  # (rows, 128)
    # h[:, ONES_LANE] == 1 (bias trick), h[:, HIDDEN+1:] == 0 (see pack_params).

    # Layer 2 on the MXU: (rows,128) @ (128,128); b2 lives in W2 row ONES_LANE.
    # Precision pinned so f32 parity with the reference is generation-independent.
    w2 = p_ref[W2_OFF:W2_OFF + LANES, :]
    return jax.lax.dot_general(
        h, w2, (((1,), (0,)), ((), ())),
        precision=jax.lax.Precision.HIGHEST,
        preferred_element_type=jnp.float32)                  # (rows, 128)


def net_kernel(x_ref, p_ref, o_ref):
    """Q-value forward.  o_ref: (rows, 128) lane-dense; real Q in [:N_ACTIONS]."""
    o_ref[...] = _q_tile(x_ref, p_ref).astype(o_ref.dtype)


def greedy_kernel(x_ref, p_ref, a_ref):
    """Fused forward + greedy argmax.  a_ref: (rows, 1) int32."""
    q = _q_tile(x_ref, p_ref)                                         # (rows, 128)
    col = jax.lax.broadcasted_iota(jnp.int32, q.shape, 1)
    qm = jnp.where(col < N_ACTIONS, q, -jnp.inf)                      # mask padded lanes
    qmax = jnp.max(qm, axis=1, keepdims=True)
    idx = jnp.where(qm == qmax, col, LANES)                           # sentinel for non-max
    a_ref[...] = jnp.min(idx, axis=1, keepdims=True).astype(a_ref.dtype)  # first max


# ----------------------------- param packing ---------------------------------

def pack_params(w1, b1, w2, b2):
    """Pack (W1, b1, W2, b2) into a single lane-dense (SLAB_ROWS, 128) f32 slab.

    INVARIANT (bias fold): rows [0, W2_OFF) leave all lanes >= HIDDEN at zero
    EXCEPT slab[B1_ROW, ONES_LANE] == 1, so in-kernel h[:, ONES_LANE] ==
    relu(0*x + 1) == 1 and the W2 row at W2_OFF+ONES_LANE adds b2.  Any future
    non-zero write into lanes [HIDDEN+1, 128) of those rows silently corrupts
    the outputs.
    """
    assert w1.shape == (N_STATES, HIDDEN) and b1.shape == (HIDDEN,)
    assert w2.shape == (HIDDEN, N_ACTIONS) and b2.shape == (N_ACTIONS,)
    slab = jnp.zeros((SLAB_ROWS, LANES), jnp.float32)
    slab = slab.at[:N_STATES, :HIDDEN].set(w1)                           # W1 (4, 50)
    slab = slab.at[B1_ROW, :HIDDEN].set(b1.reshape(-1))                  # b1
    slab = slab.at[B1_ROW, ONES_LANE].set(1.0)                           # constant-1 lane
    slab = slab.at[W2_OFF:W2_OFF + HIDDEN, :N_ACTIONS].set(w2)           # W2 (50, 2)
    slab = slab.at[W2_OFF + ONES_LANE, :N_ACTIONS].set(b2.reshape(-1))   # b2 as W2 row
    return slab


# ----------------------------- wrappers ---------------------------------------

def _batch_blocking(B, block_b):
    bb = min(block_b, _round_up(B, 8))
    Bp = _round_up(B, bb)
    return bb, Bp


def net_forward(x, param_slab, *, block_b=B_BLOCK):
    """x: (B, N_STATES) f32, param_slab from pack_params. Returns (B, N_ACTIONS)."""
    B = x.shape[0]

    if B <= 8:
        # Gridless fast path: per-decision inference is pure fixed overhead,
        # a grid would only add prologue cost.
        y = pl.pallas_call(
            net_kernel,
            out_shape=jax.ShapeDtypeStruct((B, LANES), jnp.float32),
            in_specs=[pl.BlockSpec(memory_space=pltpu.MemorySpace.VMEM),
                      pl.BlockSpec(memory_space=pltpu.MemorySpace.VMEM)],
            out_specs=pl.BlockSpec(memory_space=pltpu.MemorySpace.VMEM),
        )(x, param_slab)
        return y[:, :N_ACTIONS]

    # Batched replay-forward path: grid over B, param slab grid-invariant.
    bb, Bp = _batch_blocking(B, block_b)
    if Bp != B:
        x = jnp.pad(x, ((0, Bp - B), (0, 0)))
    y = pl.pallas_call(
        net_kernel,
        out_shape=jax.ShapeDtypeStruct((Bp, LANES), jnp.float32),
        grid=(Bp // bb,),
        in_specs=[pl.BlockSpec((bb, N_STATES), lambda i: (i, 0)),
                  # grid-invariant block: DMA'd once, stays VMEM-resident
                  pl.BlockSpec((SLAB_ROWS, LANES), lambda i: (0, 0))],
        out_specs=pl.BlockSpec((bb, LANES), lambda i: (i, 0)),
        compiler_params=pltpu.CompilerParams(
            dimension_semantics=("parallel",)),   # shards across both TCs on v7x
    )(x, param_slab)
    # Slice padded rows / padded action columns off before any downstream argmax.
    return y[:B, :N_ACTIONS]


def dual_net_forward(x, slab_eval, slab_target, *, block_b=B_BLOCK):
    """Eval-net + target-net forwards in ONE pallas_call (one dispatch).

    Returns (q_eval, q_target), each (B, N_ACTIONS).
    """
    B = x.shape[0]
    slabs = jnp.stack([slab_eval, slab_target])      # (2, SLAB_ROWS, LANES)
    bb, Bp = _batch_blocking(B, block_b)
    if Bp != B:
        x = jnp.pad(x, ((0, Bp - B), (0, 0)))
    y = pl.pallas_call(
        net_kernel,
        out_shape=jax.ShapeDtypeStruct((2, Bp, LANES), jnp.float32),
        grid=(2, Bp // bb),                          # (net, batch-block)
        in_specs=[pl.BlockSpec((bb, N_STATES), lambda n, i: (i, 0)),
                  # leading dim squeezed: kernel sees the (SLAB_ROWS, LANES) slab
                  pl.BlockSpec((None, SLAB_ROWS, LANES), lambda n, i: (n, 0, 0))],
        out_specs=pl.BlockSpec((None, bb, LANES), lambda n, i: (n, i, 0)),
        compiler_params=pltpu.CompilerParams(
            dimension_semantics=("parallel", "parallel")),
    )(x, slabs)
    return y[0, :B, :N_ACTIONS], y[1, :B, :N_ACTIONS]


def net_greedy_action(x, param_slab, *, block_b=B_BLOCK):
    """Fused forward + argmax over actions.  Returns int32 (B,) greedy actions."""
    B = x.shape[0]

    if B <= 8:
        a = pl.pallas_call(
            greedy_kernel,
            out_shape=jax.ShapeDtypeStruct((B, 1), jnp.int32),
            in_specs=[pl.BlockSpec(memory_space=pltpu.MemorySpace.VMEM),
                      pl.BlockSpec(memory_space=pltpu.MemorySpace.VMEM)],
            out_specs=pl.BlockSpec(memory_space=pltpu.MemorySpace.VMEM),
        )(x, param_slab)
        return a[:, 0]

    bb, Bp = _batch_blocking(B, block_b)
    if Bp != B:
        x = jnp.pad(x, ((0, Bp - B), (0, 0)))
    a = pl.pallas_call(
        greedy_kernel,
        out_shape=jax.ShapeDtypeStruct((Bp, 1), jnp.int32),
        grid=(Bp // bb,),
        in_specs=[pl.BlockSpec((bb, N_STATES), lambda i: (i, 0)),
                  pl.BlockSpec((SLAB_ROWS, LANES), lambda i: (0, 0))],
        out_specs=pl.BlockSpec((bb, 1), lambda i: (i, 0)),
        compiler_params=pltpu.CompilerParams(
            dimension_semantics=("parallel",)),
    )(x, param_slab)
    return a[:B, 0]


# ----------------------------- reference / init --------------------------------

def init_params(key):
    k1, k2, k3, k4 = jax.random.split(key, 4)
    # Weights ~ Normal(0, 0.1) (matches the module's explicit init);
    # biases use PyTorch Linear's default uniform(-1/sqrt(fan_in), 1/sqrt(fan_in)).
    w1 = 0.1 * jax.random.normal(k1, (N_STATES, HIDDEN), dtype=jnp.float32)
    b1 = jax.random.uniform(k2, (HIDDEN,), dtype=jnp.float32,
                            minval=-1.0 / np.sqrt(N_STATES), maxval=1.0 / np.sqrt(N_STATES))
    w2 = 0.1 * jax.random.normal(k3, (HIDDEN, N_ACTIONS), dtype=jnp.float32)
    b2 = jax.random.uniform(k4, (N_ACTIONS,), dtype=jnp.float32,
                            minval=-1.0 / np.sqrt(HIDDEN), maxval=1.0 / np.sqrt(HIDDEN))
    return w1, b1, w2, b2


def net_reference(x, w1, b1, w2, b2):
    h = jnp.maximum(
        jnp.dot(x, w1, precision=jax.lax.Precision.HIGHEST) + b1[None, :], 0.0)
    return jnp.dot(h, w2, precision=jax.lax.Precision.HIGHEST) + b2[None, :]


# ----------------------------- main -------------------------------------------

if __name__ == "__main__":
    key = jax.random.PRNGKey(0)
    kx, kx2, kp, kp2 = jax.random.split(key, 4)

    w1, b1, w2, b2 = init_params(kp)
    slab = pack_params(w1, b1, w2, b2)

    # --- Gridless per-decision inference path (B = 8) ---
    x_small = jax.random.normal(kx, (8, N_STATES), dtype=jnp.float32)
    q_small = jax.block_until_ready(net_forward(x_small, slab))
    ref_small = net_reference(x_small, w1, b1, w2, b2)
    assert q_small.shape == (8, N_ACTIONS)
    np.testing.assert_allclose(np.asarray(q_small), np.asarray(ref_small),
                               rtol=1e-5, atol=1e-5)

    # --- Batched replay-forward path: grid over B (parallel -> both TCs on v7x) ---
    B = 500   # deliberately not a multiple of the 256-row block (exercises padding)
    x_big = jax.random.normal(kx2, (B, N_STATES), dtype=jnp.float32)
    q_big = jax.block_until_ready(net_forward(x_big, slab))
    ref_big = net_reference(x_big, w1, b1, w2, b2)
    assert q_big.shape == (B, N_ACTIONS)
    np.testing.assert_allclose(np.asarray(q_big), np.asarray(ref_big),
                               rtol=1e-5, atol=1e-5)

    # --- Fused eval-net + target-net forward (one dispatch for the learn step) ---
    w1t, b1t, w2t, b2t = init_params(kp2)
    slab_t = pack_params(w1t, b1t, w2t, b2t)
    q_eval, q_tgt = dual_net_forward(x_big, slab, slab_t)
    jax.block_until_ready((q_eval, q_tgt))
    np.testing.assert_allclose(np.asarray(q_eval), np.asarray(ref_big),
                               rtol=1e-5, atol=1e-5)
    ref_tgt = net_reference(x_big, w1t, b1t, w2t, b2t)
    np.testing.assert_allclose(np.asarray(q_tgt), np.asarray(ref_tgt),
                               rtol=1e-5, atol=1e-5)

    # --- Fused greedy-action consumer (in-kernel argmax, int32 output) ---
    a_small = jax.block_until_ready(net_greedy_action(x_small, slab))
    np.testing.assert_array_equal(np.asarray(a_small),
                                  np.argmax(np.asarray(q_small), axis=1))
    a_big = jax.block_until_ready(net_greedy_action(x_big, slab))
    np.testing.assert_array_equal(np.asarray(a_big),
                                  np.argmax(np.asarray(q_big), axis=1))

    print("KERNEL_OK")
</pallas_src>

<mosaic_0001>
module attributes {stable_mosaic.version = 11 : i64} {
  func.func @net_kernel(%arg0: memref<8x4xf32, #tpu.memory_space<vmem>>, %arg1: memref<136x128xf32, #tpu.memory_space<vmem>>, %arg2: memref<8x128xf32, #tpu.memory_space<vmem>>) attributes {dimension_semantics = [], scalar_prefetch = 0 : i64, scratch_operands = 0 : i64, tpu.core_type = #tpu.core_type<tc>} {
    %c0 = arith.constant 0 : index
    %c0_0 = arith.constant 0 : index
    %0 = vector.load %arg0[%c0, %c0_0] : memref<8x4xf32, #tpu.memory_space<vmem>>, vector<8x4xf32>
    %1 = vector.extract_strided_slice %0 {offsets = [0, 0], sizes = [8, 1], strides = [1, 1]} : vector<8x4xf32> to vector<8x1xf32>
    %c0_1 = arith.constant 0 : index
    %c0_2 = arith.constant 0 : index
    %2 = vector.load %arg1[%c0_1, %c0_2] : memref<136x128xf32, #tpu.memory_space<vmem>>, vector<1x128xf32>
    %3 = vector.broadcast %1 : vector<8x1xf32> to vector<8x128xf32>
    %4 = vector.broadcast %2 : vector<1x128xf32> to vector<8x128xf32>
    %5 = arith.mulf %3, %4 : vector<8x128xf32>
    %6 = vector.extract_strided_slice %0 {offsets = [0, 1], sizes = [8, 1], strides = [1, 1]} : vector<8x4xf32> to vector<8x1xf32>
    %c1 = arith.constant 1 : index
    %c0_3 = arith.constant 0 : index
    %7 = vector.load %arg1[%c1, %c0_3] : memref<136x128xf32, #tpu.memory_space<vmem>>, vector<1x128xf32>
    %8 = vector.broadcast %6 : vector<8x1xf32> to vector<8x128xf32>
    %9 = vector.broadcast %7 : vector<1x128xf32> to vector<8x128xf32>
    %10 = arith.mulf %8, %9 : vector<8x128xf32>
    %11 = arith.addf %5, %10 : vector<8x128xf32>
    %12 = vector.extract_strided_slice %0 {offsets = [0, 2], sizes = [8, 1], strides = [1, 1]} : vector<8x4xf32> to vector<8x1xf32>
    %c2 = arith.constant 2 : index
    %c0_4 = arith.constant 0 : index
    %13 = vector.load %arg1[%c2, %c0_4] : memref<136x128xf32, #tpu.memory_space<vmem>>, vector<1x128xf32>
    %14 = vector.broadcast %12 : vector<8x1xf32> to vector<8x128xf32>
    %15 = vector.broadcast %13 : vector<1x128xf32> to vector<8x128xf32>
    %16 = arith.mulf %14, %15 : vector<8x128xf32>
    %17 = arith.addf %11, %16 : vector<8x128xf32>
    %18 = vector.extract_strided_slice %0 {offsets = [0, 3], sizes = [8, 1], strides = [1, 1]} : vector<8x4xf32> to vector<8x1xf32>
    %c3 = arith.constant 3 : index
    %c0_5 = arith.constant 0 : index
    %19 = vector.load %arg1[%c3, %c0_5] : memref<136x128xf32, #tpu.memory_space<vmem>>, vector<1x128xf32>
    %20 = vector.broadcast %18 : vector<8x1xf32> to vector<8x128xf32>
    %21 = vector.broadcast %19 : vector<1x128xf32> to vector<8x128xf32>
    %22 = arith.mulf %20, %21 : vector<8x128xf32>
    %23 = arith.addf %17, %22 : vector<8x128xf32>
    %c4 = arith.constant 4 : index
    %c0_6 = arith.constant 0 : index
    %24 = vector.load %arg1[%c4, %c0_6] : memref<136x128xf32, #tpu.memory_space<vmem>>, vector<1x128xf32>
    %25 = vector.broadcast %24 : vector<1x128xf32> to vector<8x128xf32>
    %26 = arith.addf %23, %25 : vector<8x128xf32>
    %cst = arith.constant 0.000000e+00 : f32
    %27 = vector.broadcast %cst : f32 to vector<8x128xf32>
    %28 = arith.maximumf %26, %27 : vector<8x128xf32>
    %c8 = arith.constant 8 : index
    %c0_7 = arith.constant 0 : index
    %29 = vector.load %arg1[%c8, %c0_7] : memref<136x128xf32, #tpu.memory_space<vmem>>, vector<128x128xf32>
    %cst_8 = arith.constant dense<0.000000e+00> : vector<8x128xf32>
    %30 = tpu.matmul %28, %29, %cst_8 {dimension_numbers = #tpu.dot_dimension_numbers<[1], [0], [0], [1], [0, 0, 1, 1], [], []>, precision = #tpu.contract_precision<fp32>} : vector<8x128xf32>, vector<128x128xf32>, vector<8x128xf32> -> vector<8x128xf32>
    %c0_9 = arith.constant 0 : index
    %c0_10 = arith.constant 0 : index
    %31 = vector.load %arg2[%c0_9, %c0_10] : memref<8x128xf32, #tpu.memory_space<vmem>>, vector<8x128xf32>
    tpu.vector_store %arg2[%c0_9, %c0_10], %30 {strides = array<i32>} : memref<8x128xf32, #tpu.memory_space<vmem>>, vector<8x128xf32>,
    return
  }
}

</mosaic_0001>

<llo_original>
// kernel: tpu_custom_call.1
$region0: #{tpu_custom_call.1}
  #allocation0 [shape = 'u32[]', space=smem, size = 0x4, offset = 0x4, fixed_abs, tag = 'smem constant byte address 0x4 - core index']
  #allocation1 [shape = 'u32[72,128]{1,0:T(1,128)}', space=vmem, size = 0x9000, scoped, tag = 'internal scratch']
  %s0 = inlined_call_operand.vmem [shape: f32[8,4], index: 0, kind: input, shape index: {}]
  %s1 = inlined_call_operand.hbm [shape: f32[136,128], index: 1, kind: input, shape index: {}]
  %s2 = inlined_call_operand.hbm [shape: f32[8,128], index: 2, kind: output, shape index: {}]
  %s3 = sld [smem:[#allocation0]]
  $region22: #{tpu_custom_call.1} parent=0
    _
  %s5 = ssub.s32 1, %s3
  %s6 = scalar_select 0, %s5, %s3
  $region1: #{tpu_custom_call.1} parent=0
    #allocation2 [shape = 'u8[69632]{0}', space=vmem, size = 0x11000, scoped, tag = 'input window, operand 1, single buffered']
    #allocation3 [shape = 's32[1]{0}', space=sflag, size = 0x4, scoped, tag = 'scoped memory for tpu_custom_call.1']
    #allocation4 [shape = 's32[1]{0}', space=sflag, size = 0x4, scoped, tag = 'scoped memory for tpu_custom_call.1']
    #allocation5 [shape = 'u8[4096]{0}', space=vmem, size = 0x1000, scoped, tag = 'output window, operand 0, single buffered']
    %7 = vsyncpa [#allocation3], 0
    %8 = vsyncpa [#allocation4], 0
    // Predicated region
    $region2: #{tpu_custom_call.1} parent=1 // pred_check
      _
    $region3: #{tpu_custom_call.1} parent=1 // pred_check_branch
      %10 = sbr.rel (0) target = $region5
    $region4: #{tpu_custom_call.1} parent=1 // pred_region
      _
    $region5: #{tpu_custom_call.1} parent=1 // pred_fallthru
      _
    // Predicated region
    $region6: #{tpu_custom_call.1} parent=1 // pred_check
      _
    $region7: #{tpu_custom_call.1} parent=1 // pred_check_branch
      %12 = sbr.rel (0) target = $region9
    $region8: #{tpu_custom_call.1} parent=1 // pred_region
      %14 = vsyncadd [#allocation3], 0
      %s15 = sshll.u32 %s1, 4
      %s16 = int_to_ptr.hbm [resolvable:$true] %s15
      %s17 = sshll.u32 [#allocation2], 4
      %s18 = int_to_ptr.vmem [resolvable:$true] %s17
      %23 = dma.hbm_to_vmem [thread:$0]  %s16, 2176, %s18, [#allocation3], 128, 128, 8
    $region9: #{tpu_custom_call.1} parent=1 // pred_fallthru
      _
    // Predicated region
    $region10: #{tpu_custom_call.1} parent=1 // pred_check
      _
    $region11: #{tpu_custom_call.1} parent=1 // pred_check_branch
      %25 = sbr.rel (0) target = $region13
    $region12: #{tpu_custom_call.1} parent=1 // pred_region
      %27 = dma.done [#allocation3], 2176
    $region13: #{tpu_custom_call.1} parent=1 // pred_fallthru
      _
    %v28 = vld [vmem:[%s0] sm:$0xff]
    %v29 = vld [vmem:[#allocation2] sm:$0x1]
    %31 = vset.pattern.permute.xlu0 0
    %32 = vperm.xlu0 %31, %v28
    %v33 = vpop.permute.xlu0 %32
    %v35 = vperm.slane %v29, 0
    %v36 = vmul.f32 %v33, %v35
    %v37 = vld [vmem:[#allocation2 + $0x1] sm:$0x1]
    %38 = vset.pattern.permute.xlu0 1
    %39 = vperm.xlu0 %38, %v28
    %v40 = vpop.permute.xlu0 %39
    %v42 = vperm.slane %v37, 0
    %v43 = vmul.f32 %v40, %v42
    %v44 = vadd.f32 %v36, %v43
    %v45 = vld [vmem:[#allocation2 + $0x2] sm:$0x1]
    %46 = vset.pattern.permute.xlu0 2
    %47 = vperm.xlu0 %46, %v28
    %v48 = vpop.permute.xlu0 %47
    %v50 = vperm.slane %v45, 0
    %v51 = vmul.f32 %v48, %v50
    %v52 = vadd.f32 %v44, %v51
    %v53 = vld [vmem:[#allocation2 + $0x3] sm:$0x1]
    %54 = vset.pattern.permute.xlu0 3
    %55 = vperm.xlu0 %54, %v28
    %v56 = vpop.permute.xlu0 %55
    %v58 = vperm.slane %v53, 0
    %v59 = vmul.f32 %v56, %v58
    %v60 = vadd.f32 %v52, %v59
    %v61 = vld [vmem:[#allocation2 + $0x4] sm:$0x1]
    %v62 = vperm.slane %v61, 0
    %v63 = vadd.f32 %v60, %v62
    %v64 = vmax.f32 %v63, 0.0
    %v65 = vld [vmem:[#allocation2 + $0x8] sm:$0xff]
    %v66 = vld [vmem:[#allocation2 + $0x10] sm:$0xff]
    %v67 = vld [vmem:[#allocation2 + $0x18] sm:$0xff]
    %v68 = vld [vmem:[#allocation2 + $0x20] sm:$0xff]
    %v69 = vld [vmem:[#allocation2 + $0x28] sm:$0xff]
    %v70 = vld [vmem:[#allocation2 + $0x30] sm:$0xff]
    %v71 = vld [vmem:[#allocation2 + $0x38] sm:$0xff]
    %v72 = vld [vmem:[#allocation2 + $0x40] sm:$0xff]
    %v73 = vld [vmem:[#allocation2 + $0x48] sm:$0xff]
    %v74 = vld [vmem:[#allocation2 + $0x50] sm:$0xff]
    %v75 = vld [vmem:[#allocation2 + $0x58] sm:$0xff]
    %v76 = vld [vmem:[#allocation2 + $0x60] sm:$0xff]
    %v77 = vld [vmem:[#allocation2 + $0x68] sm:$0xff]
    %v78 = vld [vmem:[#allocation2 + $0x70] sm:$0xff]
    %v79 = vld [vmem:[#allocation2 + $0x78] sm:$0xff]
    %v80 = vld [vmem:[#allocation2 + $0x80] sm:$0xff]
    %v81 = vand.u32 %v80, 4294901760
    %82 = vmatpush.msra.mxu0 %v81
    %v83 = vand.u32 %v79, 4294901760
    %84 = vmatpush.msra.mxu0 %v83
    %v85 = vand.u32 %v78, 4294901760
    %86 = vmatpush.msra.mxu0 %v85
    %v87 = vand.u32 %v77, 4294901760
    %88 = vmatpush.msra.mxu0 %v87
    %v89 = vand.u32 %v76, 4294901760
    %90 = vmatpush.msra.mxu0 %v89
    %v91 = vand.u32 %v75, 4294901760
    %92 = vmatpush.msra.mxu0 %v91
    %v93 = vand.u32 %v74, 4294901760
    %94 = vmatpush.msra.mxu0 %v93
    %v95 = vand.u32 %v73, 4294901760
    %96 = vmatpush.msra.mxu0 %v95
    %v97 = vand.u32 %v72, 4294901760
    %98 = vmatpush.msra.mxu0 %v97
    %v99 = vand.u32 %v71, 4294901760
    %100 = vmatpush.msra.mxu0 %v99
    %v101 = vand.u32 %v70, 4294901760
    %102 = vmatpush.msra.mxu0 %v101
    %v103 = vand.u32 %v69, 4294901760
    %104 = vmatpush.msra.mxu0 %v103
    %v105 = vand.u32 %v68, 4294901760
    %106 = vmatpush.msra.mxu0 %v105
    %v107 = vand.u32 %v67, 4294901760
    %108 = vmatpush.msra.mxu0 %v107
    %v109 = vand.u32 %v66, 4294901760
    %110 = vmatpush.msra.mxu0 %v109
    %v111 = vand.u32 %v65, 4294901760
    %112 = vmatpush.msra.mxu0 %v111
    %v113 = vand.u32 %v64, 4294901760
    %v114 = vsub.f32 %v64, %v113
    %v115 = vand.u32 %v114, 4294901760
    %v116 = vsub.f32 %v114, %v115
    %v117 = vand.u32 %v116, 4294901760
    %118 = vmatmul.f32.gmra.mxu0 %v117
    %v119 = vpop.f32.mrf.mxu0
    %v120 = vadd.f32 0.0, %v119
    %121 = vdwg.mxu0
    %v122 = vand.u32 %v80, 4294901760
    %v123 = vsub.f32 %v80, %v122
    %v124 = vand.u32 %v123, 4294901760
    %v125 = vsub.f32 %v123, %v124
    %v126 = vand.u32 %v125, 4294901760
    %127 = vmatpush.msra.mxu0 %v126
    %v128 = vand.u32 %v79, 4294901760
    %v129 = vsub.f32 %v79, %v128
    %v130 = vand.u32 %v129, 4294901760
    %v131 = vsub.f32 %v129, %v130
    %v132 = vand.u32 %v131, 4294901760
    %133 = vmatpush.msra.mxu0 %v132
    %v134 = vand.u32 %v78, 4294901760
    %v135 = vsub.f32 %v78, %v134
    %v136 = vand.u32 %v135, 4294901760
    %v137 = vsub.f32 %v135, %v136
    %v138 = vand.u32 %v137, 4294901760
    %139 = vmatpush.msra.mxu0 %v138
    %v140 = vand.u32 %v77, 4294901760
    %v141 = vsub.f32 %v77, %v140
    %v142 = vand.u32 %v141, 4294901760
    %v143 = vsub.f32 %v141, %v142
    %v144 = vand.u32 %v143, 4294901760
    %145 = vmatpush.msra.mxu0 %v144
    %v146 = vand.u32 %v76, 4294901760
    %v147 = vsub.f32 %v76, %v146
    %v148 = vand.u32 %v147, 4294901760
    %v149 = vsub.f32 %v147, %v148
    %v150 = vand.u32 %v149, 4294901760
    %151 = vmatpush.msra.mxu0 %v150
    %v152 = vand.u32 %v75, 4294901760
    %v153 = vsub.f32 %v75, %v152
    %v154 = vand.u32 %v153, 4294901760
    %v155 = vsub.f32 %v153, %v154
    %v156 = vand.u32 %v155, 4294901760
    %157 = vmatpush.msra.mxu0 %v156
    %v158 = vand.u32 %v74, 4294901760
    %v159 = vsub.f32 %v74, %v158
    %v160 = vand.u32 %v159, 4294901760
    %v161 = vsub.f32 %v159, %v160
    %v162 = vand.u32 %v161, 4294901760
    %163 = vmatpush.msra.mxu0 %v162
    %v164 = vand.u32 %v73, 4294901760
    %v165 = vsub.f32 %v73, %v164
    %v166 = vand.u32 %v165, 4294901760
    %v167 = vsub.f32 %v165, %v166
    %v168 = vand.u32 %v167, 4294901760
    %169 = vmatpush.msra.mxu0 %v168
    %v170 = vand.u32 %v72, 4294901760
    %v171 = vsub.f32 %v72, %v170
    %v172 = vand.u32 %v171, 4294901760
    %v173 = vsub.f32 %v171, %v172
    %v174 = vand.u32 %v173, 4294901760
    %175 = vmatpush.msra.mxu0 %v174
    %v176 = vand.u32 %v71, 4294901760
    %v177 = vsub.f32 %v71, %v176
    %v178 = vand.u32 %v177, 4294901760
    %v179 = vsub.f32 %v177, %v178
    %v180 = vand.u32 %v179, 4294901760
    %181 = vmatpush.msra.mxu0 %v180
    %v182 = vand.u32 %v70, 4294901760
    %v183 = vsub.f32 %v70, %v182
    %v184 = vand.u32 %v183, 4294901760
    %v185 = vsub.f32 %v183, %v184
    %v186 = vand.u32 %v185, 4294901760
    %187 = vmatpush.msra.mxu0 %v186
    %v188 = vand.u32 %v69, 4294901760
    %v189 = vsub.f32 %v69, %v188
    %v190 = vand.u32 %v189, 4294901760
    %v191 = vsub.f32 %v189, %v190
    %v192 = vand.u32 %v191, 4294901760
    %193 = vmatpush.msra.mxu0 %v192
    %v194 = vand.u32 %v68, 4294901760
    %v195 = vsub.f32 %v68, %v194
    %v196 = vand.u32 %v195, 4294901760
    %v197 = vsub.f32 %v195, %v196
    %v198 = vand.u32 %v197, 4294901760
    %199 = vmatpush.msra.mxu0 %v198
    %v200 = vand.u32 %v67, 4294901760
    %v201 = vsub.f32 %v67, %v200
    %v202 = vand.u32 %v201, 4294901760
    %v203 = vsub.f32 %v201, %v202
    %v204 = vand.u32 %v203, 4294901760
    %205 = vmatpush.msra.mxu0 %v204
    %v206 = vand.u32 %v66, 4294901760
    %v207 = vsub.f32 %v66, %v206
    %v208 = vand.u32 %v207, 4294901760
    %v209 = vsub.f32 %v207, %v208
    %v210 = vand.u32 %v209, 4294901760
    %211 = vmatpush.msra.mxu0 %v210
    %v212 = vand.u32 %v65, 4294901760
    %v213 = vsub.f32 %v65, %v212
    %v214 = vand.u32 %v213, 4294901760
    %v215 = vsub.f32 %v213, %v214
    %v216 = vand.u32 %v215, 4294901760
    %217 = vmatpush.msra.mxu0 %v216
    %v218 = vand.u32 %v64, 4294901760
    %219 = vmatmul.f32.gmra.mxu0 %v218
    %v220 = vpop.f32.mrf.mxu0
    %v221 = vadd.f32 %v120, %v220
    %222 = vdwg.mxu0
    %v223 = vand.u32 %v80, 4294901760
    %v224 = vsub.f32 %v80, %v223
    %225 = vmatpush.msra.mxu0 %v224
    %v226 = vand.u32 %v79, 4294901760
    %v227 = vsub.f32 %v79, %v226
    %228 = vmatpush.msra.mxu0 %v227
    %v229 = vand.u32 %v78, 4294901760
    %v230 = vsub.f32 %v78, %v229
    %231 = vmatpush.msra.mxu0 %v230
    %v232 = vand.u32 %v77, 4294901760
    %v233 = vsub.f32 %v77, %v232
    %234 = vmatpush.msra.mxu0 %v233
    %v235 = vand.u32 %v76, 4294901760
    %v236 = vsub.f32 %v76, %v235
    %237 = vmatpush.msra.mxu0 %v236
    %v238 = vand.u32 %v75, 4294901760
    %v239 = vsub.f32 %v75, %v238
    %240 = vmatpush.msra.mxu0 %v239
    %v241 = vand.u32 %v74, 4294901760
    %v242 = vsub.f32 %v74, %v241
    %243 = vmatpush.msra.mxu0 %v242
    %v244 = vand.u32 %v73, 4294901760
    %v245 = vsub.f32 %v73, %v244
    %246 = vmatpush.msra.mxu0 %v245
    %v247 = vand.u32 %v72, 4294901760
    %v248 = vsub.f32 %v72, %v247
    %249 = vmatpush.msra.mxu0 %v248
    %v250 = vand.u32 %v71, 4294901760
    %v251 = vsub.f32 %v71, %v250
    %252 = vmatpush.msra.mxu0 %v251
    %v253 = vand.u32 %v70, 4294901760
    %v254 = vsub.f32 %v70, %v253
    %255 = vmatpush.msra.mxu0 %v254
    %v256 = vand.u32 %v69, 4294901760
    %v257 = vsub.f32 %v69, %v256
    %258 = vmatpush.msra.mxu0 %v257
    %v259 = vand.u32 %v68, 4294901760
    %v260 = vsub.f32 %v68, %v259
    %261 = vmatpush.msra.mxu0 %v260
    %v262 = vand.u32 %v67, 4294901760
    %v263 = vsub.f32 %v67, %v262
    %264 = vmatpush.msra.mxu0 %v263
    %v265 = vand.u32 %v66, 4294901760
    %v266 = vsub.f32 %v66, %v265
    %267 = vmatpush.msra.mxu0 %v266
    %v268 = vand.u32 %v65, 4294901760
    %v269 = vsub.f32 %v65, %v268
    %270 = vmatpush.msra.mxu0 %v269
    %v271 = vand.u32 %v64, 4294901760
    %v272 = vsub.f32 %v64, %v271
    %273 = vmatmul.f32.gmra.mxu0 %v272
    %v274 = vpop.f32.mrf.mxu0
    %v275 = vadd.f32 %v221, %v274
    %276 = vdwg.mxu0
    %v277 = vand.u32 %v80, 4294901760
    %278 = vmatpush.msra.mxu0 %v277
    %v279 = vand.u32 %v79, 4294901760
    %280 = vmatpush.msra.mxu0 %v279
    %v281 = vand.u32 %v78, 4294901760
    %282 = vmatpush.msra.mxu0 %v281
    %v283 = vand.u32 %v77, 4294901760
    %284 = vmatpush.msra.mxu0 %v283
    %v285 = vand.u32 %v76, 4294901760
    %286 = vmatpush.msra.mxu0 %v285
    %v287 = vand.u32 %v75, 4294901760
    %288 = vmatpush.msra.mxu0 %v287
    %v289 = vand.u32 %v74, 4294901760
    %290 = vmatpush.msra.mxu0 %v289
    %v291 = vand.u32 %v73, 4294901760
    %292 = vmatpush.msra.mxu0 %v291
    %v293 = vand.u32 %v72, 4294901760
    %294 = vmatpush.msra.mxu0 %v293
    %v295 = vand.u32 %v71, 4294901760
    %296 = vmatpush.msra.mxu0 %v295
    %v297 = vand.u32 %v70, 4294901760
    %298 = vmatpush.msra.mxu0 %v297
    %v299 = vand.u32 %v69, 4294901760
    %300 = vmatpush.msra.mxu0 %v299
    %v301 = vand.u32 %v68, 4294901760
    %302 = vmatpush.msra.mxu0 %v301
    %v303 = vand.u32 %v67, 4294901760
    %304 = vmatpush.msra.mxu0 %v303
    %v305 = vand.u32 %v66, 4294901760
    %306 = vmatpush.msra.mxu0 %v305
    %v307 = vand.u32 %v65, 4294901760
    %308 = vmatpush.msra.mxu0 %v307
    %v309 = vand.u32 %v64, 4294901760
    %v310 = vsub.f32 %v64, %v309
    %v311 = vand.u32 %v310, 4294901760
    %312 = vmatmul.f32.gmra.mxu0 %v311
    %v313 = vpop.f32.mrf.mxu0
    %v314 = vadd.f32 %v275, %v313
    %315 = vdwg.mxu0
    %v316 = vand.u32 %v80, 4294901760
    %v317 = vsub.f32 %v80, %v316
    %v318 = vand.u32 %v317, 4294901760
    %319 = vmatpush.msra.mxu0 %v318
    %v320 = vand.u32 %v79, 4294901760
    %v321 = vsub.f32 %v79, %v320
    %v322 = vand.u32 %v321, 4294901760
    %323 = vmatpush.msra.mxu0 %v322
    %v324 = vand.u32 %v78, 4294901760
    %v325 = vsub.f32 %v78, %v324
    %v326 = vand.u32 %v325, 4294901760
    %327 = vmatpush.msra.mxu0 %v326
    %v328 = vand.u32 %v77, 4294901760
    %v329 = vsub.f32 %v77, %v328
    %v330 = vand.u32 %v329, 4294901760
    %331 = vmatpush.msra.mxu0 %v330
    %v332 = vand.u32 %v76, 4294901760
    %v333 = vsub.f32 %v76, %v332
    %v334 = vand.u32 %v333, 4294901760
    %335 = vmatpush.msra.mxu0 %v334
    %v336 = vand.u32 %v75, 4294901760
    %v337 = vsub.f32 %v75, %v336
    %v338 = vand.u32 %v337, 4294901760
    %339 = vmatpush.msra.mxu0 %v338
    %v340 = vand.u32 %v74, 4294901760
    %v341 = vsub.f32 %v74, %v340
    %v342 = vand.u32 %v341, 4294901760
    %343 = vmatpush.msra.mxu0 %v342
    %v344 = vand.u32 %v73, 4294901760
    %v345 = vsub.f32 %v73, %v344
    %v346 = vand.u32 %v345, 4294901760
    %347 = vmatpush.msra.mxu0 %v346
    %v348 = vand.u32 %v72, 4294901760
    %v349 = vsub.f32 %v72, %v348
    %v350 = vand.u32 %v349, 4294901760
    %351 = vmatpush.msra.mxu0 %v350
    %v352 = vand.u32 %v71, 4294901760
    %v353 = vsub.f32 %v71, %v352
    %v354 = vand.u32 %v353, 4294901760
    %355 = vmatpush.msra.mxu0 %v354
    %v356 = vand.u32 %v70, 4294901760
    %v357 = vsub.f32 %v70, %v356
    %v358 = vand.u32 %v357, 4294901760
    %359 = vmatpush.msra.mxu0 %v358
    %v360 = vand.u32 %v69, 4294901760
    %v361 = vsub.f32 %v69, %v360
    %v362 = vand.u32 %v361, 4294901760
    %363 = vmatpush.msra.mxu0 %v362
    %v364 = vand.u32 %v68, 4294901760
    %v365 = vsub.f32 %v68, %v364
    %v366 = vand.u32 %v365, 4294901760
    %367 = vmatpush.msra.mxu0 %v366
    %v368 = vand.u32 %v67, 4294901760
    %v369 = vsub.f32 %v67, %v368
    %v370 = vand.u32 %v369, 4294901760
    %371 = vmatpush.msra.mxu0 %v370
    %v372 = vand.u32 %v66, 4294901760
    %v373 = vsub.f32 %v66, %v372
    %v374 = vand.u32 %v373, 4294901760
    %375 = vmatpush.msra.mxu0 %v374
    %v376 = vand.u32 %v65, 4294901760
    %v377 = vsub.f32 %v65, %v376
    %v378 = vand.u32 %v377, 4294901760
    %379 = vmatpush.msra.mxu0 %v378
    %v380 = vand.u32 %v64, 4294901760
    %381 = vmatmul.f32.gmra.mxu0 %v380
    %v382 = vpop.f32.mrf.mxu0
    %v383 = vadd.f32 %v314, %v382
    %384 = vdwg.mxu0
    %v385 = vand.u32 %v80, 4294901760
    %386 = vmatpush.msra.mxu0 %v385
    %v387 = vand.u32 %v79, 4294901760
    %388 = vmatpush.msra.mxu0 %v387
    %v389 = vand.u32 %v78, 4294901760
    %390 = vmatpush.msra.mxu0 %v389
    %v391 = vand.u32 %v77, 4294901760
    %392 = vmatpush.msra.mxu0 %v391
    %v393 = vand.u32 %v76, 4294901760
    %394 = vmatpush.msra.mxu0 %v393
    %v395 = vand.u32 %v75, 4294901760
    %396 = vmatpush.msra.mxu0 %v395
    %v397 = vand.u32 %v74, 4294901760
    %398 = vmatpush.msra.mxu0 %v397
    %v399 = vand.u32 %v73, 4294901760
    %400 = vmatpush.msra.mxu0 %v399
    %v401 = vand.u32 %v72, 4294901760
    %402 = vmatpush.msra.mxu0 %v401
    %v403 = vand.u32 %v71, 4294901760
    %404 = vmatpush.msra.mxu0 %v403
    %v405 = vand.u32 %v70, 4294901760
    %406 = vmatpush.msra.mxu0 %v405
    %v407 = vand.u32 %v69, 4294901760
    %408 = vmatpush.msra.mxu0 %v407
    %v409 = vand.u32 %v68, 4294901760
    %410 = vmatpush.msra.mxu0 %v409
    %v411 = vand.u32 %v67, 4294901760
    %412 = vmatpush.msra.mxu0 %v411
    %v413 = vand.u32 %v66, 4294901760
    %414 = vmatpush.msra.mxu0 %v413
    %v415 = vand.u32 %v65, 4294901760
    %416 = vmatpush.msra.mxu0 %v415
    %v417 = vand.u32 %v64, 4294901760
    %418 = vmatmul.f32.gmra.mxu0 %v417
    %v419 = vpop.f32.mrf.mxu0
    %v420 = vadd.f32 %v383, %v419
    %421 = vdwg.mxu0
    %422 = vst [vmem:[#allocation5] sm:$0xff] %v420
    // Predicated region
    $region14: #{tpu_custom_call.1} parent=1 // pred_check
      _
    $region15: #{tpu_custom_call.1} parent=1 // pred_check_branch
      %424 = sbr.rel (0) target = $region17
    $region16: #{tpu_custom_call.1} parent=1 // pred_region
      %426 = vsyncadd [#allocation4], 0
      %s428 = sshll.u32 [#allocation5], 4
      %s429 = int_to_ptr.vmem [resolvable:$true] %s428
      %s430 = sshll.u32 %s2, 4
      %s431 = int_to_ptr.hbm [resolvable:$true] %s430
      %433 = dma.vmem_to_hbm [thread:$0]  %s429, 128, %s431, [#allocation4]
    $region17: #{tpu_custom_call.1} parent=1 // pred_fallthru
      _
    // Predicated region
    $region18: #{tpu_custom_call.1} parent=1 // pred_check
      _
    $region19: #{tpu_custom_call.1} parent=1 // pred_check_branch
      %435 = sbr.rel (0) target = $region21
    $region20: #{tpu_custom_call.1} parent=1 // pred_region
      %437 = dma.done [#allocation4], 128
    $region21: #{tpu_custom_call.1} parent=1 // pred_fallthru
      _
    %438 = vsyncpa [#allocation3], 1
    %439 = vsyncpa [#allocation4], 1

</llo_original>
